<compile_context>
chip_gen: v5e
topology: v5e:2x2
jax: 0.10.0
libtpu: 0.0.40
codegen_flags: <defaults>
</compile_context>

<pallas_src>
import jax
import jax.numpy as jnp
from jax.experimental import pallas as pl
from jax.experimental.pallas import tpu as pltpu

EMBED_SIZE = 100
KERNEL_SIZES = [3]
NUM_CHANNELS = [100]
NUM_CLASSES = 2
PAD_LANES = 128  # lane-dense output width; sliced to NUM_CLASSES in the wrapper


def sentiment_cnn_kernel(emb_ref, cemb_ref, wconv_ref, bconv_ref,
                         wfc_ref, bfc_ref, out_ref):
    """Fused (conv1d -> avg-pool(1)) -> relu -> linear, pool-first rewrite.

    emb_ref   : (TB, S, E)          f32   embedding(inputs) tile
    cemb_ref  : (TB, S, E)          f32   constant_embedding(inputs) tile
    wconv_ref : (2*K*E, C_out)      f32   conv weight, flattened [emb|cemb] halves
    bconv_ref : (1, C_out)          f32
    wfc_ref   : (C_out, PAD_LANES)  f32   FC weight, zero-padded to 128 lanes
    bfc_ref   : (1, PAD_LANES)      f32
    out_ref   : (TB, PAD_LANES)     f32   lane-dense logits (first NUM_CLASSES valid)
    """
    TB, S, E = emb_ref.shape
    KE2, C_out = wconv_ref.shape
    K = KE2 // (2 * E)
    L = S - K + 1  # conv1d valid output length (no padding, stride 1)

    # Pool-first (exact by linearity of conv + mean): for each shift j and
    # each embedding source, the window mean over the L valid positions.
    emb = emb_ref[...].astype(jnp.float32)    # (TB, S, E)
    cemb = cemb_ref[...].astype(jnp.float32)  # (TB, S, E)
    feats = []
    for src in (emb, cemb):          # order matches the flattened conv weight
        for j in range(K):           # K is tiny (static unroll)
            feats.append(jnp.mean(src[:, j:j + L, :], axis=1))  # (TB, E)
    pooled = jnp.concatenate(feats, axis=-1)                    # (TB, 2*K*E)

    # Single MXU matmul == mean_t(conv1d(x))[b, :]; bias added after pooling
    # (equivalent to bias-before-mean since the bias is constant over t).
    acc = jnp.dot(pooled, wconv_ref[...], preferred_element_type=jnp.float32)
    enc = jnp.maximum(acc + bconv_ref[...], 0.0)                # (TB, C_out)

    # Dropout: inference-mode identity.
    # TODO(synk): training-mode stochastic dropout not implemented (eval semantics).

    # FC with lane-padded weight -> lane-dense (TB, 128) store (no vst.msk).
    logits = jnp.dot(enc, wfc_ref[...],
                     preferred_element_type=jnp.float32) + bfc_ref[...]
    out_ref[...] = logits.astype(out_ref.dtype)


def sentiment_cnn_forward(tokens, params, *, batch_tile=None):
    """Embedding gathers in plain JAX; fused conv/pool/relu/linear in Pallas."""
    # TODO(synk): embedding gather left to XLA; could be fused via scalar-prefetch
    # row gather for very small shapes where launch overhead dominates.
    emb = jnp.take(params['embedding'], tokens, axis=0)            # (B, S, E)
    cemb = jnp.take(params['constant_embedding'], tokens, axis=0)  # (B, S, E)

    B, S = tokens.shape
    E = emb.shape[-1]
    K, C_in, C_out = params['conv_w'].shape
    assert C_in == 2 * E
    n_cls = params['fc_w'].shape[1]

    # Flatten conv weight to (2*K*E, C_out): emb half then constant-emb half,
    # row order (j, e) — matches the pooled feature concat in the kernel.
    w_e = params['conv_w'][:, :E, :].reshape(K * E, C_out)
    w_c = params['conv_w'][:, E:, :].reshape(K * E, C_out)
    w_flat = jnp.concatenate([w_e, w_c], axis=0)                   # (2KE, C_out)

    # Lane-pad the FC weight/bias to 128 output lanes (dense store in-kernel).
    fc_w_pad = jnp.zeros((C_out, PAD_LANES), jnp.float32).at[:, :n_cls].set(
        params['fc_w'])
    fc_b_pad = jnp.zeros((1, PAD_LANES), jnp.float32).at[:, :n_cls].set(
        params['fc_b'])

    if batch_tile is None:
        batch_tile = B if B <= 8 else 8
    grid = (pl.cdiv(B, batch_tile),)

    out_pad = pl.pallas_call(
        sentiment_cnn_kernel,
        out_shape=jax.ShapeDtypeStruct((B, PAD_LANES), jnp.float32),
        grid_spec=pltpu.PrefetchScalarGridSpec(
            num_scalar_prefetch=0,
            grid=grid,
            in_specs=[
                pl.BlockSpec((batch_tile, S, E), lambda i: (i, 0, 0)),
                pl.BlockSpec((batch_tile, S, E), lambda i: (i, 0, 0)),
                pl.BlockSpec((2 * K * E, C_out), lambda i: (0, 0)),
                pl.BlockSpec((1, C_out), lambda i: (0, 0)),
                pl.BlockSpec((C_out, PAD_LANES), lambda i: (0, 0)),
                pl.BlockSpec((1, PAD_LANES), lambda i: (0, 0)),
            ],
            out_specs=pl.BlockSpec((batch_tile, PAD_LANES), lambda i: (i, 0)),
        ),
        compiler_params=pltpu.CompilerParams(
            dimension_semantics=("parallel",)),
    )(emb, cemb, w_flat, params['conv_b'], fc_w_pad, fc_b_pad)

    return out_pad[:, :n_cls]


def reference_forward(tokens, params):
    """Pure-JAX reference mirroring the PyTorch module (eval mode)."""
    emb = jnp.take(params['embedding'], tokens, axis=0)
    cemb = jnp.take(params['constant_embedding'], tokens, axis=0)
    x = jnp.concatenate([emb, cemb], axis=-1)                      # (B, S, 2E)
    K = params['conv_w'].shape[0]
    S = x.shape[1]
    L = S - K + 1
    y = jnp.zeros((x.shape[0], L, params['conv_w'].shape[-1]), jnp.float32)
    for j in range(K):
        y = y + jnp.einsum('bsc,co->bso', x[:, j:j + L, :],
                           params['conv_w'][j],
                           precision=jax.lax.Precision.HIGHEST)
    y = y + params['conv_b']                                       # conv bias
    enc = jnp.maximum(jnp.mean(y, axis=1), 0.0)                    # pool -> relu
    return jnp.dot(enc, params['fc_w'],
                   precision=jax.lax.Precision.HIGHEST) + params['fc_b']


if __name__ == "__main__":
    assert len(KERNEL_SIZES) == 1 and len(NUM_CHANNELS) == 1

    vocab_size, batch, seq = 50, 2, 8
    key = jax.random.PRNGKey(0)
    k_tok, k_e1, k_e2, k_cw, k_cb, k_fw, k_fb = jax.random.split(key, 7)

    tokens = jax.random.randint(k_tok, (batch, seq), 0, vocab_size,
                                dtype=jnp.int32)

    params = {
        'embedding':
            0.02 * jax.random.normal(k_e1, (vocab_size, EMBED_SIZE), jnp.float32),
        'constant_embedding':
            0.02 * jax.random.normal(k_e2, (vocab_size, EMBED_SIZE), jnp.float32),
        # PyTorch Conv1d weight is (C_out, C_in, K); stored here as (K, C_in, C_out).
        'conv_w':
            0.02 * jax.random.normal(
                k_cw, (KERNEL_SIZES[0], 2 * EMBED_SIZE, NUM_CHANNELS[0]),
                jnp.float32),
        'conv_b':
            0.02 * jax.random.normal(k_cb, (1, NUM_CHANNELS[0]), jnp.float32),
        # PyTorch Linear weight is (2, sum(num_channels)); stored transposed.
        'fc_w':
            0.02 * jax.random.normal(k_fw, (sum(NUM_CHANNELS), NUM_CLASSES),
                                     jnp.float32),
        'fc_b':
            0.02 * jax.random.normal(k_fb, (1, NUM_CLASSES), jnp.float32),
    }

    out = sentiment_cnn_forward(tokens, params)
    jax.block_until_ready(out)
    assert out.shape == (batch, NUM_CLASSES), out.shape

    ref = reference_forward(tokens, params)
    assert jnp.allclose(out, ref, atol=1e-3, rtol=1e-3), (
        "mismatch vs reference", out, ref)

    print("KERNEL_OK")
</pallas_src>

<mosaic_0001>
module attributes {stable_mosaic.version = 11 : i64} {
  func.func @sentiment_cnn_kernel(%arg0: i32, %arg1: memref<2x8x100xf32, #tpu.memory_space<vmem>>, %arg2: memref<2x8x100xf32, #tpu.memory_space<vmem>>, %arg3: memref<600x100xf32, #tpu.memory_space<vmem>>, %arg4: memref<1x100xf32, #tpu.memory_space<vmem>>, %arg5: memref<100x128xf32, #tpu.memory_space<vmem>>, %arg6: memref<1x128xf32, #tpu.memory_space<vmem>>, %arg7: memref<2x128xf32, #tpu.memory_space<vmem>>) attributes {dimension_semantics = [#tpu.dimension_semantics<parallel>], iteration_bounds = array<i64: 1>, scalar_prefetch = 0 : i64, scratch_operands = 0 : i64, tpu.core_type = #tpu.core_type<tc>, window_params = [{transform_indices = @transform_0, window_bounds = array<i64: 2, 8, 100>}, {transform_indices = @transform_1, window_bounds = array<i64: 2, 8, 100>}, {pipeline_mode = #tpu.pipeline_mode<synchronous>, transform_indices = @transform_2, window_bounds = array<i64: 600, 100>}, {pipeline_mode = #tpu.pipeline_mode<synchronous>, transform_indices = @transform_3, window_bounds = array<i64: 1, 100>}, {pipeline_mode = #tpu.pipeline_mode<synchronous>, transform_indices = @transform_4, window_bounds = array<i64: 100, 128>}, {pipeline_mode = #tpu.pipeline_mode<synchronous>, transform_indices = @transform_5, window_bounds = array<i64: 1, 128>}, {transform_indices = @transform_6, window_bounds = array<i64: 2, 128>}]} {
    %c0 = arith.constant 0 : index
    %c0_0 = arith.constant 0 : index
    %c0_1 = arith.constant 0 : index
    %0 = vector.load %arg1[%c0, %c0_0, %c0_1] : memref<2x8x100xf32, #tpu.memory_space<vmem>>, vector<2x8x100xf32>
    %c0_2 = arith.constant 0 : index
    %c0_3 = arith.constant 0 : index
    %c0_4 = arith.constant 0 : index
    %1 = vector.load %arg2[%c0_2, %c0_3, %c0_4] : memref<2x8x100xf32, #tpu.memory_space<vmem>>, vector<2x8x100xf32>
    %2 = vector.extract_strided_slice %0 {offsets = [0, 0, 0], sizes = [2, 6, 100], strides = [1, 1, 1]} : vector<2x8x100xf32> to vector<2x6x100xf32>
    %cst = arith.constant dense<0.000000e+00> : vector<2x100xf32>
    %3 = vector.multi_reduction <add>, %2, %cst [1] : vector<2x6x100xf32> to vector<2x100xf32>
    %cst_5 = arith.constant 6.000000e+00 : f32
    %4 = vector.broadcast %cst_5 : f32 to vector<2x100xf32>
    %5 = arith.divf %3, %4 : vector<2x100xf32>
    %6 = vector.extract_strided_slice %0 {offsets = [0, 1, 0], sizes = [2, 6, 100], strides = [1, 1, 1]} : vector<2x8x100xf32> to vector<2x6x100xf32>
    %cst_6 = arith.constant dense<0.000000e+00> : vector<2x100xf32>
    %7 = vector.multi_reduction <add>, %6, %cst_6 [1] : vector<2x6x100xf32> to vector<2x100xf32>
    %cst_7 = arith.constant 6.000000e+00 : f32
    %8 = vector.broadcast %cst_7 : f32 to vector<2x100xf32>
    %9 = arith.divf %7, %8 : vector<2x100xf32>
    %10 = vector.extract_strided_slice %0 {offsets = [0, 2, 0], sizes = [2, 6, 100], strides = [1, 1, 1]} : vector<2x8x100xf32> to vector<2x6x100xf32>
    %cst_8 = arith.constant dense<0.000000e+00> : vector<2x100xf32>
    %11 = vector.multi_reduction <add>, %10, %cst_8 [1] : vector<2x6x100xf32> to vector<2x100xf32>
    %cst_9 = arith.constant 6.000000e+00 : f32
    %12 = vector.broadcast %cst_9 : f32 to vector<2x100xf32>
    %13 = arith.divf %11, %12 : vector<2x100xf32>
    %14 = vector.extract_strided_slice %1 {offsets = [0, 0, 0], sizes = [2, 6, 100], strides = [1, 1, 1]} : vector<2x8x100xf32> to vector<2x6x100xf32>
    %cst_10 = arith.constant dense<0.000000e+00> : vector<2x100xf32>
    %15 = vector.multi_reduction <add>, %14, %cst_10 [1] : vector<2x6x100xf32> to vector<2x100xf32>
    %cst_11 = arith.constant 6.000000e+00 : f32
    %16 = vector.broadcast %cst_11 : f32 to vector<2x100xf32>
    %17 = arith.divf %15, %16 : vector<2x100xf32>
    %18 = vector.extract_strided_slice %1 {offsets = [0, 1, 0], sizes = [2, 6, 100], strides = [1, 1, 1]} : vector<2x8x100xf32> to vector<2x6x100xf32>
    %cst_12 = arith.constant dense<0.000000e+00> : vector<2x100xf32>
    %19 = vector.multi_reduction <add>, %18, %cst_12 [1] : vector<2x6x100xf32> to vector<2x100xf32>
    %cst_13 = arith.constant 6.000000e+00 : f32
    %20 = vector.broadcast %cst_13 : f32 to vector<2x100xf32>
    %21 = arith.divf %19, %20 : vector<2x100xf32>
    %22 = vector.extract_strided_slice %1 {offsets = [0, 2, 0], sizes = [2, 6, 100], strides = [1, 1, 1]} : vector<2x8x100xf32> to vector<2x6x100xf32>
    %cst_14 = arith.constant dense<0.000000e+00> : vector<2x100xf32>
    %23 = vector.multi_reduction <add>, %22, %cst_14 [1] : vector<2x6x100xf32> to vector<2x100xf32>
    %cst_15 = arith.constant 6.000000e+00 : f32
    %24 = vector.broadcast %cst_15 : f32 to vector<2x100xf32>
    %25 = arith.divf %23, %24 : vector<2x100xf32>
    %26 = tpu.concatenate %5, %9, %13, %17, %21, %25 in 1 : vector<2x100xf32>, vector<2x100xf32>, vector<2x100xf32>, vector<2x100xf32>, vector<2x100xf32>, vector<2x100xf32> -> vector<2x600xf32>
    %c0_16 = arith.constant 0 : index
    %c0_17 = arith.constant 0 : index
    %27 = vector.load %arg3[%c0_16, %c0_17] : memref<600x100xf32, #tpu.memory_space<vmem>>, vector<600x100xf32>
    %cst_18 = arith.constant dense<0.000000e+00> : vector<2x100xf32>
    %28 = tpu.matmul %26, %27, %cst_18 {dimension_numbers = #tpu.dot_dimension_numbers<[1], [0], [0], [1], [0, 0, 1, 1], [], []>} : vector<2x600xf32>, vector<600x100xf32>, vector<2x100xf32> -> vector<2x100xf32>
    %c0_19 = arith.constant 0 : index
    %c0_20 = arith.constant 0 : index
    %29 = vector.load %arg4[%c0_19, %c0_20] : memref<1x100xf32, #tpu.memory_space<vmem>>, vector<1x100xf32>
    %30 = vector.broadcast %29 : vector<1x100xf32> to vector<2x100xf32>
    %31 = arith.addf %28, %30 : vector<2x100xf32>
    %cst_21 = arith.constant 0.000000e+00 : f32
    %32 = vector.broadcast %cst_21 : f32 to vector<2x100xf32>
    %33 = arith.maximumf %31, %32 : vector<2x100xf32>
    %c0_22 = arith.constant 0 : index
    %c0_23 = arith.constant 0 : index
    %34 = vector.load %arg5[%c0_22, %c0_23] : memref<100x128xf32, #tpu.memory_space<vmem>>, vector<100x128xf32>
    %cst_24 = arith.constant dense<0.000000e+00> : vector<2x128xf32>
    %35 = tpu.matmul %33, %34, %cst_24 {dimension_numbers = #tpu.dot_dimension_numbers<[1], [0], [0], [1], [0, 0, 1, 1], [], []>} : vector<2x100xf32>, vector<100x128xf32>, vector<2x128xf32> -> vector<2x128xf32>
    %c0_25 = arith.constant 0 : index
    %c0_26 = arith.constant 0 : index
    %36 = vector.load %arg6[%c0_25, %c0_26] : memref<1x128xf32, #tpu.memory_space<vmem>>, vector<1x128xf32>
    %37 = vector.broadcast %36 : vector<1x128xf32> to vector<2x128xf32>
    %38 = arith.addf %35, %37 : vector<2x128xf32>
    %c0_27 = arith.constant 0 : index
    %c0_28 = arith.constant 0 : index
    %39 = vector.load %arg7[%c0_27, %c0_28] : memref<2x128xf32, #tpu.memory_space<vmem>>, vector<2x128xf32>
    tpu.vector_store %arg7[%c0_27, %c0_28], %38 {strides = array<i32>} : memref<2x128xf32, #tpu.memory_space<vmem>>, vector<2x128xf32>,
    return
  }
  func.func @transform_0(%arg0: i32) -> (i32, i32, i32) {
    %c0_i32 = arith.constant 0 : i32
    %c0_i32_0 = arith.constant 0 : i32
    %c0_i32_1 = arith.constant 0 : i32
    return %arg0, %c0_i32, %c0_i32_0 : i32, i32, i32
  }
  func.func @transform_1(%arg0: i32) -> (i32, i32, i32) {
    %c0_i32 = arith.constant 0 : i32
    %c0_i32_0 = arith.constant 0 : i32
    %c0_i32_1 = arith.constant 0 : i32
    return %arg0, %c0_i32, %c0_i32_0 : i32, i32, i32
  }
  func.func @transform_2(%arg0: i32) -> (i32, i32) {
    %c0_i32 = arith.constant 0 : i32
    %c0_i32_0 = arith.constant 0 : i32
    %c0_i32_1 = arith.constant 0 : i32
    return %c0_i32, %c0_i32_0 : i32, i32
  }
  func.func @transform_3(%arg0: i32) -> (i32, i32) {
    %c0_i32 = arith.constant 0 : i32
    %c0_i32_0 = arith.constant 0 : i32
    %c0_i32_1 = arith.constant 0 : i32
    return %c0_i32, %c0_i32_0 : i32, i32
  }
  func.func @transform_4(%arg0: i32) -> (i32, i32) {
    %c0_i32 = arith.constant 0 : i32
    %c0_i32_0 = arith.constant 0 : i32
    %c0_i32_1 = arith.constant 0 : i32
    return %c0_i32, %c0_i32_0 : i32, i32
  }
  func.func @transform_5(%arg0: i32) -> (i32, i32) {
    %c0_i32 = arith.constant 0 : i32
    %c0_i32_0 = arith.constant 0 : i32
    %c0_i32_1 = arith.constant 0 : i32
    return %c0_i32, %c0_i32_0 : i32, i32
  }
  func.func @transform_6(%arg0: i32) -> (i32, i32) {
    %c0_i32 = arith.constant 0 : i32
    %c0_i32_0 = arith.constant 0 : i32
    return %arg0, %c0_i32 : i32, i32
  }
}

</mosaic_0001>

<llo_original>
// kernel: tpu_custom_call.1
$region0: #{tpu_custom_call.1}
  #allocation0 [shape = 'u32[]', space=smem, size = 0x4, offset = 0x4, fixed_abs, tag = 'smem constant byte address 0x4 - core index']
  #allocation1 [shape = 'u32[72,128]{1,0:T(1,128)}', space=vmem, size = 0x9000, scoped, tag = 'internal scratch']
  %s0 = inlined_call_operand.vmem [shape: f32[2,8,100], index: 0, kind: input, shape index: {}]
  %s1 = inlined_call_operand.vmem [shape: f32[2,8,100], index: 1, kind: input, shape index: {}]
  %s2 = inlined_call_operand.vmem [shape: f32[600,100], index: 2, kind: input, shape index: {}]
  %s3 = inlined_call_operand.vmem [shape: f32[1,100], index: 3, kind: input, shape index: {}]
  %s4 = inlined_call_operand.vmem [shape: f32[100,128], index: 4, kind: input, shape index: {}]
  %s5 = inlined_call_operand.vmem [shape: f32[1,128], index: 5, kind: input, shape index: {}]
  %s6 = inlined_call_operand.hbm [shape: f32[2,128], index: 6, kind: output, shape index: {}]
  %s7 = sld [smem:[#allocation0]]
  $region34: #{tpu_custom_call.1} parent=0
    _
  %s9 = ssub.s32 1, %s7
  %s10 = scalar_select 0, %s9, %s7
  $region1: #{tpu_custom_call.1} parent=0
    #allocation2 [shape = 'u8[1024]{0}', space=vmem, size = 0x400, scoped, tag = 'output window, operand 0, single buffered']
    #allocation3 [shape = 's32[1]{0}', space=sflag, size = 0x4, scoped, tag = 'scoped memory for tpu_custom_call.1']
    %11 = vsyncpa [#allocation3], 0
    // Predicated region
    $region2: #{tpu_custom_call.1} parent=1 // pred_check
      _
    $region3: #{tpu_custom_call.1} parent=1 // pred_check_branch
      %13 = sbr.rel (0) target = $region5
    $region4: #{tpu_custom_call.1} parent=1 // pred_region
      _
    $region5: #{tpu_custom_call.1} parent=1 // pred_fallthru
      _
    // Predicated region
    $region6: #{tpu_custom_call.1} parent=1 // pred_check
      _
    $region7: #{tpu_custom_call.1} parent=1 // pred_check_branch
      %15 = sbr.rel (0) target = $region9
    $region8: #{tpu_custom_call.1} parent=1 // pred_region
      _
    $region9: #{tpu_custom_call.1} parent=1 // pred_fallthru
      _
    // Predicated region
    $region10: #{tpu_custom_call.1} parent=1 // pred_check
      _
    $region11: #{tpu_custom_call.1} parent=1 // pred_check_branch
      %17 = sbr.rel (0) target = $region13
    $region12: #{tpu_custom_call.1} parent=1 // pred_region
      _
    $region13: #{tpu_custom_call.1} parent=1 // pred_fallthru
      _
    // Predicated region
    $region14: #{tpu_custom_call.1} parent=1 // pred_check
      _
    $region15: #{tpu_custom_call.1} parent=1 // pred_check_branch
      %19 = sbr.rel (0) target = $region17
    $region16: #{tpu_custom_call.1} parent=1 // pred_region
      _
    $region17: #{tpu_custom_call.1} parent=1 // pred_fallthru
      _
    // Predicated region
    $region18: #{tpu_custom_call.1} parent=1 // pred_check
      _
    $region19: #{tpu_custom_call.1} parent=1 // pred_check_branch
      %21 = sbr.rel (0) target = $region21
    $region20: #{tpu_custom_call.1} parent=1 // pred_region
      _
    $region21: #{tpu_custom_call.1} parent=1 // pred_fallthru
      _
    // Predicated region
    $region22: #{tpu_custom_call.1} parent=1 // pred_check
      _
    $region23: #{tpu_custom_call.1} parent=1 // pred_check_branch
      %23 = sbr.rel (0) target = $region25
    $region24: #{tpu_custom_call.1} parent=1 // pred_region
      _
    $region25: #{tpu_custom_call.1} parent=1 // pred_fallthru
      _
    %v24 = vld [vmem:[%s0] sm:$0xff]
    %v25 = vld [vmem:[%s0 + $0x8] sm:$0xff]
    %v26 = vld [vmem:[%s1] sm:$0xff]
    %v27 = vld [vmem:[%s1 + $0x8] sm:$0xff]
    %vm28 = vcmask 816128
    %v29 = vsel %vm28, %v24, 0.0
    %v30 = vrot.slane %v29, 4
    %v31 = vadd.f32 %v29, %v30
    %v32 = vrot.slane %v31, 2
    %v33 = vadd.f32 %v31, %v32
    %v34 = vrot.slane %v33, 1
    %v35 = vadd.f32 %v33, %v34
    %v36 = vsel %vm28, %v25, 0.0
    %v37 = vrot.slane %v36, 4
    %v38 = vadd.f32 %v36, %v37
    %v39 = vrot.slane %v38, 2
    %v40 = vadd.f32 %v38, %v39
    %v41 = vrot.slane %v40, 1
    %v42 = vadd.f32 %v40, %v41
    %v43 = vrcp.pop 6.0
    %v44 = vmul.f32 6.0, %v43
    %v45 = vsub.f32 1.0, %v44
    %v46 = vmul.f32 %v43, %v45
    %v47 = vadd.f32 %v43, %v46
    %vm48 = vweird.f32 %v43
    %v49 = vsel %vm48, %v43, %v47
    %v50 = vmul.f32 %v35, %v49
    %v51 = vmul.f32 %v42, %v49
    %v54 = vrot.slane %v24, 1
    %v55 = vrot.slane %v25, 1
    %v58 = vsel %vm28, %v54, 0.0
    %v59 = vrot.slane %v58, 4
    %v60 = vadd.f32 %v58, %v59
    %v61 = vrot.slane %v60, 2
    %v62 = vadd.f32 %v60, %v61
    %v63 = vrot.slane %v62, 1
    %v64 = vadd.f32 %v62, %v63
    %v65 = vsel %vm28, %v55, 0.0
    %v66 = vrot.slane %v65, 4
    %v67 = vadd.f32 %v65, %v66
    %v68 = vrot.slane %v67, 2
    %v69 = vadd.f32 %v67, %v68
    %v70 = vrot.slane %v69, 1
    %v71 = vadd.f32 %v69, %v70
    %v72 = vmul.f32 %v64, %v49
    %v73 = vmul.f32 %v71, %v49
    %v74 = vrot.slane %v24, 2
    %v75 = vrot.slane %v25, 2
    %v78 = vsel %vm28, %v74, 0.0
    %v79 = vrot.slane %v78, 4
    %v80 = vadd.f32 %v78, %v79
    %v81 = vrot.slane %v80, 2
    %v82 = vadd.f32 %v80, %v81
    %v83 = vrot.slane %v82, 1
    %v84 = vadd.f32 %v82, %v83
    %v85 = vsel %vm28, %v75, 0.0
    %v86 = vrot.slane %v85, 4
    %v87 = vadd.f32 %v85, %v86
    %v88 = vrot.slane %v87, 2
    %v89 = vadd.f32 %v87, %v88
    %v90 = vrot.slane %v89, 1
    %v91 = vadd.f32 %v89, %v90
    %v92 = vmul.f32 %v84, %v49
    %v93 = vmul.f32 %v91, %v49
    %v94 = vsel %vm28, %v26, 0.0
    %v95 = vrot.slane %v94, 4
    %v96 = vadd.f32 %v94, %v95
    %v97 = vrot.slane %v96, 2
    %v98 = vadd.f32 %v96, %v97
    %v99 = vrot.slane %v98, 1
    %v100 = vadd.f32 %v98, %v99
    %v101 = vsel %vm28, %v27, 0.0
    %v102 = vrot.slane %v101, 4
    %v103 = vadd.f32 %v101, %v102
    %v104 = vrot.slane %v103, 2
    %v105 = vadd.f32 %v103, %v104
    %v106 = vrot.slane %v105, 1
    %v107 = vadd.f32 %v105, %v106
    %v108 = vmul.f32 %v100, %v49
    %v109 = vmul.f32 %v107, %v49
    %v112 = vrot.slane %v26, 1
    %v113 = vrot.slane %v27, 1
    %v116 = vsel %vm28, %v112, 0.0
    %v117 = vrot.slane %v116, 4
    %v118 = vadd.f32 %v116, %v117
    %v119 = vrot.slane %v118, 2
    %v120 = vadd.f32 %v118, %v119
    %v121 = vrot.slane %v120, 1
    %v122 = vadd.f32 %v120, %v121
    %v123 = vsel %vm28, %v113, 0.0
    %v124 = vrot.slane %v123, 4
    %v125 = vadd.f32 %v123, %v124
    %v126 = vrot.slane %v125, 2
    %v127 = vadd.f32 %v125, %v126
    %v128 = vrot.slane %v127, 1
    %v129 = vadd.f32 %v127, %v128
    %v130 = vmul.f32 %v122, %v49
    %v131 = vmul.f32 %v129, %v49
    %v132 = vrot.slane %v26, 2
    %v133 = vrot.slane %v27, 2
    %v136 = vsel %vm28, %v132, 0.0
    %v137 = vrot.slane %v136, 4
    %v138 = vadd.f32 %v136, %v137
    %v139 = vrot.slane %v138, 2
    %v140 = vadd.f32 %v138, %v139
    %v141 = vrot.slane %v140, 1
    %v142 = vadd.f32 %v140, %v141
    %v143 = vsel %vm28, %v133, 0.0
    %v144 = vrot.slane %v143, 4
    %v145 = vadd.f32 %v143, %v144
    %v146 = vrot.slane %v145, 2
    %v147 = vadd.f32 %v145, %v146
    %v148 = vrot.slane %v147, 1
    %v149 = vadd.f32 %v147, %v148
    %v150 = vmul.f32 %v142, %v49
    %v151 = vmul.f32 %v149, %v49
    %vm154 = vcmask 1041409
    %v155 = vsel %vm154, %v51, %v50
    %v159 = vsel %vm154, %v73, %v72
    %160 = vrot.lane.b32.xlu0 %v159, 100
    %v161 = vpop.permute.xlu0 %160
    %v165 = vsel %vm154, %v93, %v92
    %166 = vrot.lane.b32.xlu0 %v165, 72
    %v167 = vpop.permute.xlu0 %166
    %v171 = vsel %vm154, %v109, %v108
    %172 = vrot.lane.b32.xlu0 %v171, 44
    %v173 = vpop.permute.xlu0 %172
    %v177 = vsel %vm154, %v131, %v130
    %178 = vrot.lane.b32.xlu0 %v177, 16
    %v179 = vpop.permute.xlu0 %178
    %v183 = vsel %vm154, %v151, %v150
    %184 = vrot.lane.b32.xlu0 %v183, 116
    %v185 = vpop.permute.xlu0 %184
    %vm187 = vcmask 818176
    %v188 = vsel %vm187, %v155, %v161
    %vm189 = vcmask 588800
    %v190 = vsel %vm189, %v161, %v167
    %vm191 = vcmask 359424
    %v192 = vsel %vm191, %v167, %v173
    %vm193 = vcmask 130048
    %v194 = vsel %vm193, %v173, %v179
    %vm195 = vcmask 949248
    %v196 = vsel %vm195, %v194, %v185
    %v197 = vld [vmem:[%s2] sm:$0xff]
    %v198 = vld [vmem:[%s2 + $0x8] sm:$0xff]
    %v199 = vld [vmem:[%s2 + $0x10] sm:$0xff]
    %v200 = vld [vmem:[%s2 + $0x18] sm:$0xff]
    %v201 = vld [vmem:[%s2 + $0x20] sm:$0xff]
    %v202 = vld [vmem:[%s2 + $0x28] sm:$0xff]
    %v203 = vld [vmem:[%s2 + $0x30] sm:$0xff]
    %v204 = vld [vmem:[%s2 + $0x38] sm:$0xff]
    %v205 = vld [vmem:[%s2 + $0x40] sm:$0xff]
    %v206 = vld [vmem:[%s2 + $0x48] sm:$0xff]
    %v207 = vld [vmem:[%s2 + $0x50] sm:$0xff]
    %v208 = vld [vmem:[%s2 + $0x58] sm:$0xff]
    %v209 = vld [vmem:[%s2 + $0x60] sm:$0xff]
    %v210 = vld [vmem:[%s2 + $0x68] sm:$0xff]
    %v211 = vld [vmem:[%s2 + $0x70] sm:$0xff]
    %v212 = vld [vmem:[%s2 + $0x78] sm:$0xff]
    %v213 = vld [vmem:[%s2 + $0x80] sm:$0xff]
    %v214 = vld [vmem:[%s2 + $0x88] sm:$0xff]
    %v215 = vld [vmem:[%s2 + $0x90] sm:$0xff]
    %v216 = vld [vmem:[%s2 + $0x98] sm:$0xff]
    %v217 = vld [vmem:[%s2 + $0xa0] sm:$0xff]
    %v218 = vld [vmem:[%s2 + $0xa8] sm:$0xff]
    %v219 = vld [vmem:[%s2 + $0xb0] sm:$0xff]
    %v220 = vld [vmem:[%s2 + $0xb8] sm:$0xff]
    %v221 = vld [vmem:[%s2 + $0xc0] sm:$0xff]
    %v222 = vld [vmem:[%s2 + $0xc8] sm:$0xff]
    %v223 = vld [vmem:[%s2 + $0xd0] sm:$0xff]
    %v224 = vld [vmem:[%s2 + $0xd8] sm:$0xff]
    %v225 = vld [vmem:[%s2 + $0xe0] sm:$0xff]
    %v226 = vld [vmem:[%s2 + $0xe8] sm:$0xff]
    %v227 = vld [vmem:[%s2 + $0xf0] sm:$0xff]
    %v228 = vld [vmem:[%s2 + $0xf8] sm:$0xff]
    %v229 = vld [vmem:[%s2 + $0x100] sm:$0xff]
    %v230 = vld [vmem:[%s2 + $0x108] sm:$0xff]
    %v231 = vld [vmem:[%s2 + $0x110] sm:$0xff]
    %v232 = vld [vmem:[%s2 + $0x118] sm:$0xff]
    %v233 = vld [vmem:[%s2 + $0x120] sm:$0xff]
    %v234 = vld [vmem:[%s2 + $0x128] sm:$0xff]
    %v235 = vld [vmem:[%s2 + $0x130] sm:$0xff]
    %v236 = vld [vmem:[%s2 + $0x138] sm:$0xff]
    %v237 = vld [vmem:[%s2 + $0x140] sm:$0xff]
    %v238 = vld [vmem:[%s2 + $0x148] sm:$0xff]
    %v239 = vld [vmem:[%s2 + $0x150] sm:$0xff]
    %v240 = vld [vmem:[%s2 + $0x158] sm:$0xff]
    %v241 = vld [vmem:[%s2 + $0x160] sm:$0xff]
    %v242 = vld [vmem:[%s2 + $0x168] sm:$0xff]
    %v243 = vld [vmem:[%s2 + $0x170] sm:$0xff]
    %v244 = vld [vmem:[%s2 + $0x178] sm:$0xff]
    %v245 = vld [vmem:[%s2 + $0x180] sm:$0xff]
    %v246 = vld [vmem:[%s2 + $0x188] sm:$0xff]
    %v247 = vld [vmem:[%s2 + $0x190] sm:$0xff]
    %v248 = vld [vmem:[%s2 + $0x198] sm:$0xff]
    %v249 = vld [vmem:[%s2 + $0x1a0] sm:$0xff]
    %v250 = vld [vmem:[%s2 + $0x1a8] sm:$0xff]
    %v251 = vld [vmem:[%s2 + $0x1b0] sm:$0xff]
    %v252 = vld [vmem:[%s2 + $0x1b8] sm:$0xff]
    %v253 = vld [vmem:[%s2 + $0x1c0] sm:$0xff]
    %v254 = vld [vmem:[%s2 + $0x1c8] sm:$0xff]
    %v255 = vld [vmem:[%s2 + $0x1d0] sm:$0xff]
    %v256 = vld [vmem:[%s2 + $0x1d8] sm:$0xff]
    %v257 = vld [vmem:[%s2 + $0x1e0] sm:$0xff]
    %v258 = vld [vmem:[%s2 + $0x1e8] sm:$0xff]
    %v259 = vld [vmem:[%s2 + $0x1f0] sm:$0xff]
    %v260 = vld [vmem:[%s2 + $0x1f8] sm:$0xff]
    %v261 = vld [vmem:[%s2 + $0x200] sm:$0xff]
    %v262 = vld [vmem:[%s2 + $0x208] sm:$0xff]
    %v263 = vld [vmem:[%s2 + $0x210] sm:$0xff]
    %v264 = vld [vmem:[%s2 + $0x218] sm:$0xff]
    %v265 = vld [vmem:[%s2 + $0x220] sm:$0xff]
    %v266 = vld [vmem:[%s2 + $0x228] sm:$0xff]
    %v267 = vld [vmem:[%s2 + $0x230] sm:$0xff]
    %v268 = vld [vmem:[%s2 + $0x238] sm:$0xff]
    %v269 = vld [vmem:[%s2 + $0x240] sm:$0xff]
    %v270 = vld [vmem:[%s2 + $0x248] sm:$0xff]
    %v271 = vld [vmem:[%s2 + $0x250] sm:$0xff]
    %v272 = vld [vmem:[%s3] sm:$0x1]
    %v274 = vperm.slane %v272, 0
    %vm276 = vcmask 719872
    %v277 = vsel %vm276, %v185, 0
    %279 = vmatpush.msra.mxu0 %v212
    %280 = vmatpush.msra.mxu0 %v211
    %281 = vmatpush.msra.mxu0 %v210
    %282 = vmatpush.msra.mxu0 %v209
    %283 = vmatpush.msra.mxu0 %v208
    %284 = vmatpush.msra.mxu0 %v207
    %285 = vmatpush.msra.mxu0 %v206
    %286 = vmatpush.msra.mxu0 %v205
    %287 = vmatpush.msra.mxu0 %v204
    %288 = vmatpush.msra.mxu0 %v203
    %289 = vmatpush.msra.mxu0 %v202
    %290 = vmatpush.msra.mxu0 %v201
    %291 = vmatpush.msra.mxu0 %v200
    %292 = vmatpush.msra.mxu0 %v199
    %293 = vmatpush.msra.mxu0 %v198
    %294 = vmatpush.msra.mxu0 %v197
    %295 = vmatmul.f32.gmra.mxu0 %v188
    %v296 = vpop.f32.mrf.mxu0
    %v297 = vadd.f32 %v274, %v296
    %298 = vdwg.mxu0
    %299 = vmatpush.msra.mxu0 %v228
    %300 = vmatpush.msra.mxu0 %v227
    %301 = vmatpush.msra.mxu0 %v226
    %302 = vmatpush.msra.mxu0 %v225
    %303 = vmatpush.msra.mxu0 %v224
    %304 = vmatpush.msra.mxu0 %v223
    %305 = vmatpush.msra.mxu0 %v222
    %306 = vmatpush.msra.mxu0 %v221
    %307 = vmatpush.msra.mxu0 %v220
    %308 = vmatpush.msra.mxu0 %v219
    %309 = vmatpush.msra.mxu0 %v218
    %310 = vmatpush.msra.mxu0 %v217
    %311 = vmatpush.msra.mxu0 %v216
    %312 = vmatpush.msra.mxu0 %v215
    %313 = vmatpush.msra.mxu0 %v214
    %314 = vmatpush.msra.mxu0 %v213
    %315 = vmatmul.f32.gmra.mxu0 %v190
    %v316 = vpop.f32.mrf.mxu0
    %v317 = vadd.f32 %v297, %v316
    %318 = vdwg.mxu0
    %319 = vmatpush.msra.mxu0 %v244
    %320 = vmatpush.msra.mxu0 %v243
    %321 = vmatpush.msra.mxu0 %v242
    %322 = vmatpush.msra.mxu0 %v241
    %323 = vmatpush.msra.mxu0 %v240
    %324 = vmatpush.msra.mxu0 %v239
    %325 = vmatpush.msra.mxu0 %v238
    %326 = vmatpush.msra.mxu0 %v237
    %327 = vmatpush.msra.mxu0 %v236
    %328 = vmatpush.msra.mxu0 %v235
    %329 = vmatpush.msra.mxu0 %v234
    %330 = vmatpush.msra.mxu0 %v233
    %331 = vmatpush.msra.mxu0 %v232
    %332 = vmatpush.msra.mxu0 %v231
    %333 = vmatpush.msra.mxu0 %v230
    %334 = vmatpush.msra.mxu0 %v229
    %335 = vmatmul.f32.gmra.mxu0 %v192
    %v336 = vpop.f32.mrf.mxu0
    %v337 = vadd.f32 %v317, %v336
    %338 = vdwg.mxu0
    %339 = vmatpush.msra.mxu0 %v260
    %340 = vmatpush.msra.mxu0 %v259
    %341 = vmatpush.msra.mxu0 %v258
    %342 = vmatpush.msra.mxu0 %v257
    %343 = vmatpush.msra.mxu0 %v256
    %344 = vmatpush.msra.mxu0 %v255
    %345 = vmatpush.msra.mxu0 %v254
    %346 = vmatpush.msra.mxu0 %v253
    %347 = vmatpush.msra.mxu0 %v252
    %348 = vmatpush.msra.mxu0 %v251
    %349 = vmatpush.msra.mxu0 %v250
    %350 = vmatpush.msra.mxu0 %v249
    %351 = vmatpush.msra.mxu0 %v248
    %352 = vmatpush.msra.mxu0 %v247
    %353 = vmatpush.msra.mxu0 %v246
    %354 = vmatpush.msra.mxu0 %v245
    %355 = vmatmul.f32.gmra.mxu0 %v196
    %v356 = vpop.f32.mrf.mxu0
    %v357 = vadd.f32 %v337, %v356
    %358 = vdwg.mxu0
    %359 = vmatpush.msra.mxu0 0.0
    %360 = vmatpush.msra.mxu0 0.0
    %361 = vmatpush.msra.mxu0 0.0
    %362 = vmatpush.msra.mxu0 0.0
    %363 = vmatpush.msra.mxu0 0.0
    %364 = vmatpush.msra.mxu0 %v271
    %365 = vmatpush.msra.mxu0 %v270
    %366 = vmatpush.msra.mxu0 %v269
    %367 = vmatpush.msra.mxu0 %v268
    %368 = vmatpush.msra.mxu0 %v267
    %369 = vmatpush.msra.mxu0 %v266
    %370 = vmatpush.msra.mxu0 %v265
    %371 = vmatpush.msra.mxu0 %v264
    %372 = vmatpush.msra.mxu0 %v263
    %373 = vmatpush.msra.mxu0 %v262
    %374 = vmatpush.msra.mxu0 %v261
    %375 = vmatmul.f32.gmra.mxu0 %v277
    %v376 = vpop.f32.mrf.mxu0
    %v377 = vadd.f32 %v357, %v376
    %378 = vdwg.mxu0
    %v379 = vmax.f32 %v377, 0.0
    %v380 = vld [vmem:[%s4] sm:$0xff]
    %v381 = vld [vmem:[%s4 + $0x8] sm:$0xff]
    %v382 = vld [vmem:[%s4 + $0x10] sm:$0xff]
    %v383 = vld [vmem:[%s4 + $0x18] sm:$0xff]
    %v384 = vld [vmem:[%s4 + $0x20] sm:$0xff]
    %v385 = vld [vmem:[%s4 + $0x28] sm:$0xff]
    %v386 = vld [vmem:[%s4 + $0x30] sm:$0xff]
    %v387 = vld [vmem:[%s4 + $0x38] sm:$0xff]
    %v388 = vld [vmem:[%s4 + $0x40] sm:$0xff]
    %v389 = vld [vmem:[%s4 + $0x48] sm:$0xff]
    %v390 = vld [vmem:[%s4 + $0x50] sm:$0xff]
    %v391 = vld [vmem:[%s4 + $0x58] sm:$0xff]
    %v392 = vld [vmem:[%s4 + $0x60] sm:$0xf]
    %v393 = vld [vmem:[%s5] sm:$0x1]
    %v395 = vperm.slane %v393, 0
    %v398 = vsel %vm187, %v379, 0
    %vm400 = vcmask 1043456
    %v402 = vsel %vm400, %v392, 0
    %404 = vmatpush.msra.mxu0 0.0
    %405 = vmatpush.msra.mxu0 0.0
    %406 = vmatpush.msra.mxu0 0.0
    %407 = vmatpush.msra.mxu0 %v402
    %408 = vmatpush.msra.mxu0 %v391
    %409 = vmatpush.msra.mxu0 %v390
    %410 = vmatpush.msra.mxu0 %v389
    %411 = vmatpush.msra.mxu0 %v388
    %412 = vmatpush.msra.mxu0 %v387
    %413 = vmatpush.msra.mxu0 %v386
    %414 = vmatpush.msra.mxu0 %v385
    %415 = vmatpush.msra.mxu0 %v384
    %416 = vmatpush.msra.mxu0 %v383
    %417 = vmatpush.msra.mxu0 %v382
    %418 = vmatpush.msra.mxu0 %v381
    %419 = vmatpush.msra.mxu0 %v380
    %420 = vmatmul.f32.gmra.mxu0 %v398
    %v421 = vpop.f32.mrf.mxu0
    %v422 = vadd.f32 %v395, %v421
    %423 = vdwg.mxu0
    %424 = vst [vmem:[#allocation2] sm:$0x3] %v422
    // Predicated region
    $region26: #{tpu_custom_call.1} parent=1 // pred_check
      _
    $region27: #{tpu_custom_call.1} parent=1 // pred_check_branch
      %426 = sbr.rel (0) target = $region29
    $region28: #{tpu_custom_call.1} parent=1 // pred_region
      %428 = vsyncadd [#allocation3], 0
      %s430 = sshll.u32 [#allocation2], 4
      %s431 = int_to_ptr.vmem [resolvable:$true] %s430
      %s432 = sshll.u32 %s6, 4
      %s433 = int_to_ptr.hbm [resolvable:$true] %s432
      %435 = dma.vmem_to_hbm [thread:$0]  %s431, 32, %s433, [#allocation3]
    $region29: #{tpu_custom_call.1} parent=1 // pred_fallthru
      _
    // Predicated region
    $region30: #{tpu_custom_call.1} parent=1 // pred_check
      _
    $region31: #{tpu_custom_call.1} parent=1 // pred_check_branch
      %437 = sbr.rel (0) target = $region33
    $region32: #{tpu_custom_call.1} parent=1 // pred_region
      %439 = dma.done [#allocation3], 32
    $region33: #{tpu_custom_call.1} parent=1 // pred_fallthru
      _
    %440 = vsyncpa [#allocation3], 1

</llo_original>
